<compile_context>
chip_gen: v5e
topology: v5e:2x2
jax: 0.10.0
libtpu: 0.0.40
codegen_flags: <defaults>
</compile_context>

<pallas_src>
import functools

import numpy as np
import jax
import jax.numpy as jnp
from jax.experimental import pallas as pl
from jax.experimental.pallas import tpu as pltpu


# ----------------------------------------------------------------------------
# e3nn-style glue (deterministic, dense, host-side parameter construction)
# ----------------------------------------------------------------------------
def rs_simplify(Rs):
    out = []
    for mul, l, p in Rs:
        if out and out[-1][1] == l and out[-1][2] == p:
            out[-1] = (out[-1][0] + mul, l, p)
        else:
            out.append((mul, l, p))
    return [(m, l, p) for m, l, p in out if m > 0]


def rs_dim(Rs):
    return sum(mul * (2 * l + 1) for mul, l, _ in Rs)


def wigner_3j(l1, l2, l3):
    # Real-basis 3j symbols for l <= 1 (structurally correct, synthetic basis).
    # TODO(synk): general-l Wigner-3j (e3nn o3.wigner_3j) not implemented; example uses l in {0,1}.
    if (l1, l2, l3) == (0, 0, 0):
        return np.ones((1, 1, 1))
    if (l1, l2, l3) == (1, 1, 0):
        return np.eye(3).reshape(3, 3, 1) / np.sqrt(3.0)
    if (l1, l2, l3) == (1, 0, 1):
        return np.eye(3).reshape(3, 1, 3) / np.sqrt(3.0)
    if (l1, l2, l3) == (0, 1, 1):
        return np.eye(3).reshape(1, 3, 3) / np.sqrt(3.0)
    if (l1, l2, l3) == (1, 1, 1):
        e = np.zeros((3, 3, 3))
        e[0, 1, 2] = e[1, 2, 0] = e[2, 0, 1] = 1.0
        e[0, 2, 1] = e[2, 1, 0] = e[1, 0, 2] = -1.0
        return e / np.sqrt(6.0)
    raise NotImplementedError((l1, l2, l3))


def tensor_product(Rs_1, Rs_2, lfilter):
    """Returns (Rs_ts, T) with T dense of shape [dim(Rs_ts), dim1 * dim2]."""
    dim1, dim2 = rs_dim(Rs_1), rs_dim(Rs_2)
    Rs_ts, rows = [], []
    off1 = 0
    for mul1, l1, p1 in Rs_1:
        d1 = 2 * l1 + 1
        off2 = 0
        for mul2, l2, p2 in Rs_2:
            d2 = 2 * l2 + 1
            for l in range(abs(l1 - l2), l1 + l2 + 1):
                if not lfilter(l):
                    continue
                d = 2 * l + 1
                Rs_ts.append((mul1 * mul2, l, p1 * p2))
                C = wigner_3j(l1, l2, l) * np.sqrt(d)  # [d1, d2, d]
                block = np.zeros((mul1 * mul2 * d, dim1 * dim2))
                for u in range(mul1):
                    for v in range(mul2):
                        i1 = off1 + u * d1
                        i2 = off2 + v * d2
                        for m in range(d):
                            row = (u * mul2 + v) * d + m
                            for m1 in range(d1):
                                for m2 in range(d2):
                                    block[row, (i1 + m1) * dim2 + (i2 + m2)] = C[m1, m2, m]
                rows.append(block)
            off2 += mul2 * d2
        off1 += mul1 * d1
    T = np.concatenate(rows, axis=0)
    # NOTE: Rs_ts is intentionally left unsimplified; kernel_linear's `tot`
    # normalization sums multiplicities over the unsimplified list.
    return Rs_ts, T


def kernel_linear(Rs_in, Rs_out, rng):
    """Equivariant linear map; returns dense matrix [dim(Rs_out), dim(Rs_in)]."""
    W = np.zeros((rs_dim(Rs_out), rs_dim(Rs_in)))
    off_o = 0
    for mul_o, l_o, p_o in Rs_out:
        d = 2 * l_o + 1
        tot = sum(m for m, l, p in Rs_in if (l, p) == (l_o, p_o))
        off_i = 0
        for mul_i, l_i, p_i in Rs_in:
            d_i = 2 * l_i + 1
            if (l_i, p_i) == (l_o, p_o):
                w = rng.standard_normal((mul_o, mul_i)) / np.sqrt(max(tot, 1))
                W[off_o:off_o + mul_o * d, off_i:off_i + mul_i * d] = np.kron(w, np.eye(d))
            off_i += mul_i * d_i
        off_o += mul_o * d
    return W


# ----------------------------------------------------------------------------
# Pallas kernel
#   out[z, :] = X[z, :] @ km_flat     with X[z, i*J + j] = f1[z, i] * f2[z, j]
# ----------------------------------------------------------------------------
def _tp_kernel(f1_ref, f2_ref, km_ref, out_ref, *, cast_early):
    f1 = f1_ref[...]                       # [tz, I]  caller dtype
    f2 = f2_ref[...]                       # [tz, J]  caller dtype
    if cast_early:
        # Cast operands to the compute dtype BEFORE building the outer product.
        # Right choice on v6e/v7x (bf16 VPU/XLU -> half the vreg footprint of
        # the [tz, I*J] build).  No-op for the default f32 compute path.
        # On v5e with bf16 compute, prefer cast_early=False (no bf16 VALU).
        f1 = f1.astype(km_ref.dtype)
        f2 = f2.astype(km_ref.dtype)
    n_i = f1.shape[1]
    # Outer product X[z, i*J + j] = f1[z, i] * f2[z, j], built lane-dense as
    # I lane-broadcast multiplies + one lane concat.  Known-good Mosaic
    # lowering and the lowest peak-VMEM variant of the build; the single MXU
    # matmul below does the contraction over I*J (=256) lanes.
    x = jnp.concatenate([f1[:, i:i + 1] * f2 for i in range(n_i)], axis=1)
    # Late cast path (cast_early=False): single cast of the materialized X.
    # No-op when dtypes already match.
    x = x.astype(km_ref.dtype)
    out_ref[...] = jnp.dot(
        x, km_ref[...], preferred_element_type=jnp.float32
    ).astype(out_ref.dtype)


def tensor_product_pallas(f1, f2, km_flat, *, tz=4096, cast_early=True,
                          out_dtype=jnp.float32):
    """out[z, :] = (f1[z] outer f2[z]) @ km_flat,   km_flat : [I*J, K]."""
    Z, I = f1.shape
    Z2, J = f2.shape
    assert Z2 == Z
    IJ, K = km_flat.shape
    assert IJ == I * J
    # Clamp the z tile for tiny problems; keep it a multiple of 8 sublanes.
    # tz=4096 amortizes the ~0.35 us/step grid overhead; sweep 2048..8192.
    tz_eff = int(max(8, min(tz, ((Z + 7) // 8) * 8)))
    grid = (pl.cdiv(Z, tz_eff),)   # no host-side padding; ragged tail is masked

    cost = pl.CostEstimate(
        flops=2 * Z * I * J * K,
        transcendentals=0,
        bytes_accessed=int(
            Z * I * jnp.dtype(f1.dtype).itemsize
            + Z * J * jnp.dtype(f2.dtype).itemsize
            + Z * K * jnp.dtype(out_dtype).itemsize
            + IJ * K * jnp.dtype(km_flat.dtype).itemsize
        ),
    )

    kernel = functools.partial(_tp_kernel, cast_early=cast_early)
    return pl.pallas_call(
        kernel,
        out_shape=jax.ShapeDtypeStruct((Z, K), out_dtype),
        grid_spec=pltpu.PrefetchScalarGridSpec(
            num_scalar_prefetch=0,
            grid=grid,
            in_specs=[
                pl.BlockSpec((tz_eff, I), lambda z: (z, 0)),
                pl.BlockSpec((tz_eff, J), lambda z: (z, 0)),
                # Constant index_map -> km stays resident in VMEM across grid.
                pl.BlockSpec((IJ, K), lambda z: (0, 0)),
            ],
            # Output block last dim == K == full array dim (legal); unpadded
            # writeback: K lanes per row instead of 128, no wrapper slice.
            out_specs=pl.BlockSpec((tz_eff, K), lambda z: (z, 0)),
        ),
        compiler_params=pltpu.CompilerParams(
            dimension_semantics=("parallel",),   # shard z across v7x's 2 TCs
            # Explicit budget: covers ~10-16 MiB/step at tz=4096 f32, raises
            # v5e's 16 MiB scoped default, safe under v7x's 64 MiB physical.
            vmem_limit_bytes=32 * 1024 * 1024,
        ),
        cost_estimate=cost,
    )(f1, f2, km_flat)


# ----------------------------------------------------------------------------
# Module wrapper
# ----------------------------------------------------------------------------
class LearnableTensorProductJAX:
    def __init__(self, Rs_in1, Rs_in2, Rs_out, seed=0,
                 compute_dtype=jnp.float32, out_dtype=jnp.float32,
                 tz=4096, cast_early=True):
        self.Rs_in1 = rs_simplify(Rs_in1)
        self.Rs_in2 = rs_simplify(Rs_in2)
        self.Rs_out = rs_simplify(Rs_out)
        ls = [l for _, l, _ in self.Rs_out]
        Rs_ts, T = tensor_product(self.Rs_in1, self.Rs_in2, lambda l: l in ls)
        ls_ts = [l for _, l, _ in Rs_ts]
        assert all(l in ls_ts for _, l, _ in self.Rs_out)
        W = kernel_linear(Rs_ts, self.Rs_out, np.random.RandomState(seed))
        K = rs_dim(self.Rs_out)
        I = rs_dim(self.Rs_in1)
        J = rs_dim(self.Rs_in2)
        self.K, self.I, self.J = K, I, J
        self.tz = tz
        self.cast_early = cast_early
        self.out_dtype = out_dtype
        kij = (W @ T).reshape(K, I, J)                 # (T.t() @ W.T).T == W @ T
        self.kernel_kij = jnp.asarray(kij, dtype=jnp.float32)   # reference form
        # Flat [I*J, K] matmul operand (no lane padding; the kernel's output
        # block last dim equals the full array dim so narrow stores are legal).
        self.km_flat = jnp.asarray(kij.reshape(K, I * J).T, dtype=compute_dtype)

    def __call__(self, features_1, features_2):
        *size, n1 = features_1.shape
        f1 = features_1.reshape(-1, n1)    # keep caller dtype; cast in-kernel
        assert n1 == self.I
        *size2, n2 = features_2.shape
        f2 = features_2.reshape(-1, n2)
        assert n2 == self.J
        assert list(size) == list(size2)
        out = tensor_product_pallas(f1, f2, self.km_flat, tz=self.tz,
                                    cast_early=self.cast_early,
                                    out_dtype=self.out_dtype)
        return out.reshape(*size, self.K)


if __name__ == "__main__":
    # Irreps: Rs_in1 = Rs_in2 = 4x(l=0) + 4x(l=1) -> dim 16;
    #         Rs_out = 8x(l=0) + 8x(l=1)          -> dim 32
    mod = LearnableTensorProductJAX(
        Rs_in1=[(4, 0, 1), (4, 1, 1)],
        Rs_in2=[(4, 0, 1), (4, 1, 1)],
        Rs_out=[(8, 0, 1), (8, 1, 1)],
        seed=0,
    )

    key = jax.random.PRNGKey(0)
    k1, k2 = jax.random.split(key)
    features_1 = jax.random.normal(k1, (2, 8, 16), dtype=jnp.float32)
    features_2 = jax.random.normal(k2, (2, 8, 16), dtype=jnp.float32)

    out = mod(features_1, features_2)
    out = jax.block_until_ready(out)

    # Pure-JAX reference for the forward einsum (f32 compute path only; the
    # optional bf16 compute path needs a looser tolerance).
    f1 = features_1.reshape(-1, 16)
    f2 = features_2.reshape(-1, 16)
    ref = jnp.einsum("kij,zi,zj->zk", mod.kernel_kij, f1, f2).reshape(2, 8, -1)
    assert out.shape == (2, 8, 32), out.shape
    np.testing.assert_allclose(np.asarray(out), np.asarray(ref), rtol=1e-4, atol=1e-4)

    print("KERNEL_OK")
</pallas_src>

<mosaic_0001>
module attributes {stable_mosaic.version = 11 : i64} {
  func.func @_tp_kernel(%arg0: i32, %arg1: memref<16x16xf32, #tpu.memory_space<vmem>>, %arg2: memref<16x16xf32, #tpu.memory_space<vmem>>, %arg3: memref<256x32xf32, #tpu.memory_space<vmem>>, %arg4: memref<16x32xf32, #tpu.memory_space<vmem>>) attributes {dimension_semantics = [#tpu.dimension_semantics<parallel>], iteration_bounds = array<i64: 1>, scalar_prefetch = 0 : i64, scratch_operands = 0 : i64, tpu.core_type = #tpu.core_type<tc>, window_params = [{transform_indices = @transform_0, window_bounds = array<i64: 16, 16>}, {transform_indices = @transform_1, window_bounds = array<i64: 16, 16>}, {pipeline_mode = #tpu.pipeline_mode<synchronous>, transform_indices = @transform_2, window_bounds = array<i64: 256, 32>}, {transform_indices = @transform_3, window_bounds = array<i64: 16, 32>}]} {
    %c0 = arith.constant 0 : index
    %c0_0 = arith.constant 0 : index
    %0 = vector.load %arg1[%c0, %c0_0] : memref<16x16xf32, #tpu.memory_space<vmem>>, vector<16x16xf32>
    %c0_1 = arith.constant 0 : index
    %c0_2 = arith.constant 0 : index
    %1 = vector.load %arg2[%c0_1, %c0_2] : memref<16x16xf32, #tpu.memory_space<vmem>>, vector<16x16xf32>
    %2 = vector.extract_strided_slice %0 {offsets = [0, 0], sizes = [16, 1], strides = [1, 1]} : vector<16x16xf32> to vector<16x1xf32>
    %3 = vector.broadcast %2 : vector<16x1xf32> to vector<16x16xf32>
    %4 = arith.mulf %3, %1 : vector<16x16xf32>
    %5 = vector.extract_strided_slice %0 {offsets = [0, 1], sizes = [16, 1], strides = [1, 1]} : vector<16x16xf32> to vector<16x1xf32>
    %6 = vector.broadcast %5 : vector<16x1xf32> to vector<16x16xf32>
    %7 = arith.mulf %6, %1 : vector<16x16xf32>
    %8 = vector.extract_strided_slice %0 {offsets = [0, 2], sizes = [16, 1], strides = [1, 1]} : vector<16x16xf32> to vector<16x1xf32>
    %9 = vector.broadcast %8 : vector<16x1xf32> to vector<16x16xf32>
    %10 = arith.mulf %9, %1 : vector<16x16xf32>
    %11 = vector.extract_strided_slice %0 {offsets = [0, 3], sizes = [16, 1], strides = [1, 1]} : vector<16x16xf32> to vector<16x1xf32>
    %12 = vector.broadcast %11 : vector<16x1xf32> to vector<16x16xf32>
    %13 = arith.mulf %12, %1 : vector<16x16xf32>
    %14 = vector.extract_strided_slice %0 {offsets = [0, 4], sizes = [16, 1], strides = [1, 1]} : vector<16x16xf32> to vector<16x1xf32>
    %15 = vector.broadcast %14 : vector<16x1xf32> to vector<16x16xf32>
    %16 = arith.mulf %15, %1 : vector<16x16xf32>
    %17 = vector.extract_strided_slice %0 {offsets = [0, 5], sizes = [16, 1], strides = [1, 1]} : vector<16x16xf32> to vector<16x1xf32>
    %18 = vector.broadcast %17 : vector<16x1xf32> to vector<16x16xf32>
    %19 = arith.mulf %18, %1 : vector<16x16xf32>
    %20 = vector.extract_strided_slice %0 {offsets = [0, 6], sizes = [16, 1], strides = [1, 1]} : vector<16x16xf32> to vector<16x1xf32>
    %21 = vector.broadcast %20 : vector<16x1xf32> to vector<16x16xf32>
    %22 = arith.mulf %21, %1 : vector<16x16xf32>
    %23 = vector.extract_strided_slice %0 {offsets = [0, 7], sizes = [16, 1], strides = [1, 1]} : vector<16x16xf32> to vector<16x1xf32>
    %24 = vector.broadcast %23 : vector<16x1xf32> to vector<16x16xf32>
    %25 = arith.mulf %24, %1 : vector<16x16xf32>
    %26 = vector.extract_strided_slice %0 {offsets = [0, 8], sizes = [16, 1], strides = [1, 1]} : vector<16x16xf32> to vector<16x1xf32>
    %27 = vector.broadcast %26 : vector<16x1xf32> to vector<16x16xf32>
    %28 = arith.mulf %27, %1 : vector<16x16xf32>
    %29 = vector.extract_strided_slice %0 {offsets = [0, 9], sizes = [16, 1], strides = [1, 1]} : vector<16x16xf32> to vector<16x1xf32>
    %30 = vector.broadcast %29 : vector<16x1xf32> to vector<16x16xf32>
    %31 = arith.mulf %30, %1 : vector<16x16xf32>
    %32 = vector.extract_strided_slice %0 {offsets = [0, 10], sizes = [16, 1], strides = [1, 1]} : vector<16x16xf32> to vector<16x1xf32>
    %33 = vector.broadcast %32 : vector<16x1xf32> to vector<16x16xf32>
    %34 = arith.mulf %33, %1 : vector<16x16xf32>
    %35 = vector.extract_strided_slice %0 {offsets = [0, 11], sizes = [16, 1], strides = [1, 1]} : vector<16x16xf32> to vector<16x1xf32>
    %36 = vector.broadcast %35 : vector<16x1xf32> to vector<16x16xf32>
    %37 = arith.mulf %36, %1 : vector<16x16xf32>
    %38 = vector.extract_strided_slice %0 {offsets = [0, 12], sizes = [16, 1], strides = [1, 1]} : vector<16x16xf32> to vector<16x1xf32>
    %39 = vector.broadcast %38 : vector<16x1xf32> to vector<16x16xf32>
    %40 = arith.mulf %39, %1 : vector<16x16xf32>
    %41 = vector.extract_strided_slice %0 {offsets = [0, 13], sizes = [16, 1], strides = [1, 1]} : vector<16x16xf32> to vector<16x1xf32>
    %42 = vector.broadcast %41 : vector<16x1xf32> to vector<16x16xf32>
    %43 = arith.mulf %42, %1 : vector<16x16xf32>
    %44 = vector.extract_strided_slice %0 {offsets = [0, 14], sizes = [16, 1], strides = [1, 1]} : vector<16x16xf32> to vector<16x1xf32>
    %45 = vector.broadcast %44 : vector<16x1xf32> to vector<16x16xf32>
    %46 = arith.mulf %45, %1 : vector<16x16xf32>
    %47 = vector.extract_strided_slice %0 {offsets = [0, 15], sizes = [16, 1], strides = [1, 1]} : vector<16x16xf32> to vector<16x1xf32>
    %48 = vector.broadcast %47 : vector<16x1xf32> to vector<16x16xf32>
    %49 = arith.mulf %48, %1 : vector<16x16xf32>
    %50 = tpu.concatenate %4, %7, %10, %13, %16, %19, %22, %25, %28, %31, %34, %37, %40, %43, %46, %49 in 1 : vector<16x16xf32>, vector<16x16xf32>, vector<16x16xf32>, vector<16x16xf32>, vector<16x16xf32>, vector<16x16xf32>, vector<16x16xf32>, vector<16x16xf32>, vector<16x16xf32>, vector<16x16xf32>, vector<16x16xf32>, vector<16x16xf32>, vector<16x16xf32>, vector<16x16xf32>, vector<16x16xf32>, vector<16x16xf32> -> vector<16x256xf32>
    %c0_3 = arith.constant 0 : index
    %c0_4 = arith.constant 0 : index
    %51 = vector.load %arg3[%c0_3, %c0_4] : memref<256x32xf32, #tpu.memory_space<vmem>>, vector<256x32xf32>
    %cst = arith.constant dense<0.000000e+00> : vector<16x32xf32>
    %52 = tpu.matmul %50, %51, %cst {dimension_numbers = #tpu.dot_dimension_numbers<[1], [0], [0], [1], [0, 0, 1, 1], [], []>} : vector<16x256xf32>, vector<256x32xf32>, vector<16x32xf32> -> vector<16x32xf32>
    %c0_5 = arith.constant 0 : index
    %c0_6 = arith.constant 0 : index
    %53 = vector.load %arg4[%c0_5, %c0_6] : memref<16x32xf32, #tpu.memory_space<vmem>>, vector<16x32xf32>
    tpu.vector_store %arg4[%c0_5, %c0_6], %52 {strides = array<i32>} : memref<16x32xf32, #tpu.memory_space<vmem>>, vector<16x32xf32>,
    return
  }
  func.func @transform_0(%arg0: i32) -> (i32, i32) {
    %c0_i32 = arith.constant 0 : i32
    %c0_i32_0 = arith.constant 0 : i32
    return %arg0, %c0_i32 : i32, i32
  }
  func.func @transform_1(%arg0: i32) -> (i32, i32) {
    %c0_i32 = arith.constant 0 : i32
    %c0_i32_0 = arith.constant 0 : i32
    return %arg0, %c0_i32 : i32, i32
  }
  func.func @transform_2(%arg0: i32) -> (i32, i32) {
    %c0_i32 = arith.constant 0 : i32
    %c0_i32_0 = arith.constant 0 : i32
    %c0_i32_1 = arith.constant 0 : i32
    return %c0_i32, %c0_i32_0 : i32, i32
  }
  func.func @transform_3(%arg0: i32) -> (i32, i32) {
    %c0_i32 = arith.constant 0 : i32
    %c0_i32_0 = arith.constant 0 : i32
    return %arg0, %c0_i32 : i32, i32
  }
}

</mosaic_0001>

<llo_original>
// kernel: tpu_custom_call.1
$region0: #{tpu_custom_call.1}
  #allocation0 [shape = 'u32[]', space=smem, size = 0x4, offset = 0x4, fixed_abs, tag = 'smem constant byte address 0x4 - core index']
  #allocation1 [shape = 'u32[72,128]{1,0:T(1,128)}', space=vmem, size = 0x9000, scoped, tag = 'internal scratch']
  %s0 = inlined_call_operand.vmem [shape: f32[16,16], index: 0, kind: input, shape index: {}]
  %s1 = inlined_call_operand.vmem [shape: f32[16,16], index: 1, kind: input, shape index: {}]
  %s2 = inlined_call_operand.vmem [shape: f32[256,32], index: 2, kind: input, shape index: {}]
  %s3 = inlined_call_operand.hbm [shape: f32[16,32], index: 3, kind: output, shape index: {}]
  %s4 = sld [smem:[#allocation0]]
  $region22: #{tpu_custom_call.1} parent=0
    _
  %s6 = ssub.s32 1, %s4
  %s7 = scalar_select 0, %s6, %s4
  $region1: #{tpu_custom_call.1} parent=0
    #allocation2 [shape = 'u8[8192]{0}', space=vmem, size = 0x2000, scoped, tag = 'output window, operand 0, single buffered']
    #allocation3 [shape = 's32[1]{0}', space=sflag, size = 0x4, scoped, tag = 'scoped memory for tpu_custom_call.1']
    %8 = vsyncpa [#allocation3], 0
    // Predicated region
    $region2: #{tpu_custom_call.1} parent=1 // pred_check
      _
    $region3: #{tpu_custom_call.1} parent=1 // pred_check_branch
      %10 = sbr.rel (0) target = $region5
    $region4: #{tpu_custom_call.1} parent=1 // pred_region
      _
    $region5: #{tpu_custom_call.1} parent=1 // pred_fallthru
      _
    // Predicated region
    $region6: #{tpu_custom_call.1} parent=1 // pred_check
      _
    $region7: #{tpu_custom_call.1} parent=1 // pred_check_branch
      %12 = sbr.rel (0) target = $region9
    $region8: #{tpu_custom_call.1} parent=1 // pred_region
      _
    $region9: #{tpu_custom_call.1} parent=1 // pred_fallthru
      _
    // Predicated region
    $region10: #{tpu_custom_call.1} parent=1 // pred_check
      _
    $region11: #{tpu_custom_call.1} parent=1 // pred_check_branch
      %14 = sbr.rel (0) target = $region13
    $region12: #{tpu_custom_call.1} parent=1 // pred_region
      _
    $region13: #{tpu_custom_call.1} parent=1 // pred_fallthru
      _
    %v15 = vld [vmem:[%s0] sm:$0xff]
    %v16 = vld [vmem:[%s0 + $0x8] sm:$0xff]
    %v17 = vld [vmem:[%s1] sm:$0xff]
    %v18 = vld [vmem:[%s1 + $0x8] sm:$0xff]
    %20 = vset.pattern.permute.xlu0 0
    %21 = vperm.xlu0 %20, %v15
    %v22 = vpop.permute.xlu0 %21
    %25 = vset.pattern.permute.xlu0 0
    %26 = vperm.xlu0 %25, %v16
    %v27 = vpop.permute.xlu0 %26
    %v29 = vmul.f32 %v22, %v17
    %v30 = vmul.f32 %v27, %v18
    %31 = vset.pattern.permute.xlu0 1
    %32 = vperm.xlu0 %31, %v15
    %v33 = vpop.permute.xlu0 %32
    %35 = vset.pattern.permute.xlu0 1
    %36 = vperm.xlu0 %35, %v16
    %v37 = vpop.permute.xlu0 %36
    %v39 = vmul.f32 %v33, %v17
    %v40 = vmul.f32 %v37, %v18
    %41 = vset.pattern.permute.xlu0 2
    %42 = vperm.xlu0 %41, %v15
    %v43 = vpop.permute.xlu0 %42
    %45 = vset.pattern.permute.xlu0 2
    %46 = vperm.xlu0 %45, %v16
    %v47 = vpop.permute.xlu0 %46
    %v49 = vmul.f32 %v43, %v17
    %v50 = vmul.f32 %v47, %v18
    %51 = vset.pattern.permute.xlu0 3
    %52 = vperm.xlu0 %51, %v15
    %v53 = vpop.permute.xlu0 %52
    %55 = vset.pattern.permute.xlu0 3
    %56 = vperm.xlu0 %55, %v16
    %v57 = vpop.permute.xlu0 %56
    %v59 = vmul.f32 %v53, %v17
    %v60 = vmul.f32 %v57, %v18
    %61 = vset.pattern.permute.xlu0 4
    %62 = vperm.xlu0 %61, %v15
    %v63 = vpop.permute.xlu0 %62
    %65 = vset.pattern.permute.xlu0 4
    %66 = vperm.xlu0 %65, %v16
    %v67 = vpop.permute.xlu0 %66
    %v69 = vmul.f32 %v63, %v17
    %v70 = vmul.f32 %v67, %v18
    %71 = vset.pattern.permute.xlu0 5
    %72 = vperm.xlu0 %71, %v15
    %v73 = vpop.permute.xlu0 %72
    %75 = vset.pattern.permute.xlu0 5
    %76 = vperm.xlu0 %75, %v16
    %v77 = vpop.permute.xlu0 %76
    %v79 = vmul.f32 %v73, %v17
    %v80 = vmul.f32 %v77, %v18
    %81 = vset.pattern.permute.xlu0 6
    %82 = vperm.xlu0 %81, %v15
    %v83 = vpop.permute.xlu0 %82
    %85 = vset.pattern.permute.xlu0 6
    %86 = vperm.xlu0 %85, %v16
    %v87 = vpop.permute.xlu0 %86
    %v89 = vmul.f32 %v83, %v17
    %v90 = vmul.f32 %v87, %v18
    %91 = vset.pattern.permute.xlu0 7
    %92 = vperm.xlu0 %91, %v15
    %v93 = vpop.permute.xlu0 %92
    %95 = vset.pattern.permute.xlu0 7
    %96 = vperm.xlu0 %95, %v16
    %v97 = vpop.permute.xlu0 %96
    %v99 = vmul.f32 %v93, %v17
    %v100 = vmul.f32 %v97, %v18
    %101 = vset.pattern.permute.xlu0 8
    %102 = vperm.xlu0 %101, %v15
    %v103 = vpop.permute.xlu0 %102
    %105 = vset.pattern.permute.xlu0 8
    %106 = vperm.xlu0 %105, %v16
    %v107 = vpop.permute.xlu0 %106
    %v109 = vmul.f32 %v103, %v17
    %v110 = vmul.f32 %v107, %v18
    %111 = vset.pattern.permute.xlu0 9
    %112 = vperm.xlu0 %111, %v15
    %v113 = vpop.permute.xlu0 %112
    %115 = vset.pattern.permute.xlu0 9
    %116 = vperm.xlu0 %115, %v16
    %v117 = vpop.permute.xlu0 %116
    %v119 = vmul.f32 %v113, %v17
    %v120 = vmul.f32 %v117, %v18
    %121 = vset.pattern.permute.xlu0 10
    %122 = vperm.xlu0 %121, %v15
    %v123 = vpop.permute.xlu0 %122
    %125 = vset.pattern.permute.xlu0 10
    %126 = vperm.xlu0 %125, %v16
    %v127 = vpop.permute.xlu0 %126
    %v129 = vmul.f32 %v123, %v17
    %v130 = vmul.f32 %v127, %v18
    %131 = vset.pattern.permute.xlu0 11
    %132 = vperm.xlu0 %131, %v15
    %v133 = vpop.permute.xlu0 %132
    %135 = vset.pattern.permute.xlu0 11
    %136 = vperm.xlu0 %135, %v16
    %v137 = vpop.permute.xlu0 %136
    %v139 = vmul.f32 %v133, %v17
    %v140 = vmul.f32 %v137, %v18
    %141 = vset.pattern.permute.xlu0 12
    %142 = vperm.xlu0 %141, %v15
    %v143 = vpop.permute.xlu0 %142
    %145 = vset.pattern.permute.xlu0 12
    %146 = vperm.xlu0 %145, %v16
    %v147 = vpop.permute.xlu0 %146
    %v149 = vmul.f32 %v143, %v17
    %v150 = vmul.f32 %v147, %v18
    %151 = vset.pattern.permute.xlu0 13
    %152 = vperm.xlu0 %151, %v15
    %v153 = vpop.permute.xlu0 %152
    %155 = vset.pattern.permute.xlu0 13
    %156 = vperm.xlu0 %155, %v16
    %v157 = vpop.permute.xlu0 %156
    %v159 = vmul.f32 %v153, %v17
    %v160 = vmul.f32 %v157, %v18
    %161 = vset.pattern.permute.xlu0 14
    %162 = vperm.xlu0 %161, %v15
    %v163 = vpop.permute.xlu0 %162
    %165 = vset.pattern.permute.xlu0 14
    %166 = vperm.xlu0 %165, %v16
    %v167 = vpop.permute.xlu0 %166
    %v169 = vmul.f32 %v163, %v17
    %v170 = vmul.f32 %v167, %v18
    %171 = vset.pattern.permute.xlu0 15
    %172 = vperm.xlu0 %171, %v15
    %v173 = vpop.permute.xlu0 %172
    %175 = vset.pattern.permute.xlu0 15
    %176 = vperm.xlu0 %175, %v16
    %v177 = vpop.permute.xlu0 %176
    %v179 = vmul.f32 %v173, %v17
    %v180 = vmul.f32 %v177, %v18
    %183 = vrot.lane.b32.xlu0 %v39, 16
    %v184 = vpop.permute.xlu0 %183
    %185 = vrot.lane.b32.xlu0 %v40, 16
    %v186 = vpop.permute.xlu0 %185
    %191 = vrot.lane.b32.xlu0 %v49, 32
    %v192 = vpop.permute.xlu0 %191
    %193 = vrot.lane.b32.xlu0 %v50, 32
    %v194 = vpop.permute.xlu0 %193
    %199 = vrot.lane.b32.xlu0 %v59, 48
    %v200 = vpop.permute.xlu0 %199
    %201 = vrot.lane.b32.xlu0 %v60, 48
    %v202 = vpop.permute.xlu0 %201
    %207 = vrot.lane.b32.xlu0 %v69, 64
    %v208 = vpop.permute.xlu0 %207
    %209 = vrot.lane.b32.xlu0 %v70, 64
    %v210 = vpop.permute.xlu0 %209
    %215 = vrot.lane.b32.xlu0 %v79, 80
    %v216 = vpop.permute.xlu0 %215
    %217 = vrot.lane.b32.xlu0 %v80, 80
    %v218 = vpop.permute.xlu0 %217
    %223 = vrot.lane.b32.xlu0 %v89, 96
    %v224 = vpop.permute.xlu0 %223
    %225 = vrot.lane.b32.xlu0 %v90, 96
    %v226 = vpop.permute.xlu0 %225
    %231 = vrot.lane.b32.xlu0 %v99, 112
    %v232 = vpop.permute.xlu0 %231
    %233 = vrot.lane.b32.xlu0 %v100, 112
    %v234 = vpop.permute.xlu0 %233
    %239 = vrot.lane.b32.xlu0 %v119, 16
    %v240 = vpop.permute.xlu0 %239
    %241 = vrot.lane.b32.xlu0 %v120, 16
    %v242 = vpop.permute.xlu0 %241
    %247 = vrot.lane.b32.xlu0 %v129, 32
    %v248 = vpop.permute.xlu0 %247
    %249 = vrot.lane.b32.xlu0 %v130, 32
    %v250 = vpop.permute.xlu0 %249
    %255 = vrot.lane.b32.xlu0 %v139, 48
    %v256 = vpop.permute.xlu0 %255
    %257 = vrot.lane.b32.xlu0 %v140, 48
    %v258 = vpop.permute.xlu0 %257
    %263 = vrot.lane.b32.xlu0 %v149, 64
    %v264 = vpop.permute.xlu0 %263
    %265 = vrot.lane.b32.xlu0 %v150, 64
    %v266 = vpop.permute.xlu0 %265
    %271 = vrot.lane.b32.xlu0 %v159, 80
    %v272 = vpop.permute.xlu0 %271
    %273 = vrot.lane.b32.xlu0 %v160, 80
    %v274 = vpop.permute.xlu0 %273
    %279 = vrot.lane.b32.xlu0 %v169, 96
    %v280 = vpop.permute.xlu0 %279
    %281 = vrot.lane.b32.xlu0 %v170, 96
    %v282 = vpop.permute.xlu0 %281
    %287 = vrot.lane.b32.xlu0 %v179, 112
    %v288 = vpop.permute.xlu0 %287
    %289 = vrot.lane.b32.xlu0 %v180, 112
    %v290 = vpop.permute.xlu0 %289
    %vm293 = vcmask 130048
    %v294 = vsel %vm293, %v29, %v184
    %v295 = vsel %vm293, %v30, %v186
    %vm296 = vcmask 261120
    %v297 = vsel %vm296, %v294, %v192
    %v298 = vsel %vm296, %v295, %v194
    %vm299 = vcmask 392192
    %v300 = vsel %vm299, %v297, %v200
    %v301 = vsel %vm299, %v298, %v202
    %vm302 = vcmask 523264
    %v303 = vsel %vm302, %v300, %v208
    %v304 = vsel %vm302, %v301, %v210
    %vm305 = vcmask 654336
    %v306 = vsel %vm305, %v303, %v216
    %v307 = vsel %vm305, %v304, %v218
    %vm308 = vcmask 785408
    %v309 = vsel %vm308, %v306, %v224
    %v310 = vsel %vm308, %v307, %v226
    %vm311 = vcmask 916480
    %v312 = vsel %vm311, %v309, %v232
    %v313 = vsel %vm311, %v310, %v234
    %v314 = vsel %vm293, %v109, %v240
    %v315 = vsel %vm293, %v110, %v242
    %v316 = vsel %vm296, %v314, %v248
    %v317 = vsel %vm296, %v315, %v250
    %v318 = vsel %vm299, %v316, %v256
    %v319 = vsel %vm299, %v317, %v258
    %v320 = vsel %vm302, %v318, %v264
    %v321 = vsel %vm302, %v319, %v266
    %v322 = vsel %vm305, %v320, %v272
    %v323 = vsel %vm305, %v321, %v274
    %v324 = vsel %vm308, %v322, %v280
    %v325 = vsel %vm308, %v323, %v282
    %v326 = vsel %vm311, %v324, %v288
    %v327 = vsel %vm311, %v325, %v290
    %v328 = vld [vmem:[%s2] sm:$0xff]
    %v329 = vld [vmem:[%s2 + $0x8] sm:$0xff]
    %v330 = vld [vmem:[%s2 + $0x10] sm:$0xff]
    %v331 = vld [vmem:[%s2 + $0x18] sm:$0xff]
    %v332 = vld [vmem:[%s2 + $0x20] sm:$0xff]
    %v333 = vld [vmem:[%s2 + $0x28] sm:$0xff]
    %v334 = vld [vmem:[%s2 + $0x30] sm:$0xff]
    %v335 = vld [vmem:[%s2 + $0x38] sm:$0xff]
    %v336 = vld [vmem:[%s2 + $0x40] sm:$0xff]
    %v337 = vld [vmem:[%s2 + $0x48] sm:$0xff]
    %v338 = vld [vmem:[%s2 + $0x50] sm:$0xff]
    %v339 = vld [vmem:[%s2 + $0x58] sm:$0xff]
    %v340 = vld [vmem:[%s2 + $0x60] sm:$0xff]
    %v341 = vld [vmem:[%s2 + $0x68] sm:$0xff]
    %v342 = vld [vmem:[%s2 + $0x70] sm:$0xff]
    %v343 = vld [vmem:[%s2 + $0x78] sm:$0xff]
    %v344 = vld [vmem:[%s2 + $0x80] sm:$0xff]
    %v345 = vld [vmem:[%s2 + $0x88] sm:$0xff]
    %v346 = vld [vmem:[%s2 + $0x90] sm:$0xff]
    %v347 = vld [vmem:[%s2 + $0x98] sm:$0xff]
    %v348 = vld [vmem:[%s2 + $0xa0] sm:$0xff]
    %v349 = vld [vmem:[%s2 + $0xa8] sm:$0xff]
    %v350 = vld [vmem:[%s2 + $0xb0] sm:$0xff]
    %v351 = vld [vmem:[%s2 + $0xb8] sm:$0xff]
    %v352 = vld [vmem:[%s2 + $0xc0] sm:$0xff]
    %v353 = vld [vmem:[%s2 + $0xc8] sm:$0xff]
    %v354 = vld [vmem:[%s2 + $0xd0] sm:$0xff]
    %v355 = vld [vmem:[%s2 + $0xd8] sm:$0xff]
    %v356 = vld [vmem:[%s2 + $0xe0] sm:$0xff]
    %v357 = vld [vmem:[%s2 + $0xe8] sm:$0xff]
    %v358 = vld [vmem:[%s2 + $0xf0] sm:$0xff]
    %v359 = vld [vmem:[%s2 + $0xf8] sm:$0xff]
    %360 = vmatpush.msra.mxu0 %v343
    %361 = vmatpush.msra.mxu0 %v342
    %362 = vmatpush.msra.mxu0 %v341
    %363 = vmatpush.msra.mxu0 %v340
    %364 = vmatpush.msra.mxu0 %v339
    %365 = vmatpush.msra.mxu0 %v338
    %366 = vmatpush.msra.mxu0 %v337
    %367 = vmatpush.msra.mxu0 %v336
    %368 = vmatpush.msra.mxu0 %v335
    %369 = vmatpush.msra.mxu0 %v334
    %370 = vmatpush.msra.mxu0 %v333
    %371 = vmatpush.msra.mxu0 %v332
    %372 = vmatpush.msra.mxu0 %v331
    %373 = vmatpush.msra.mxu0 %v330
    %374 = vmatpush.msra.mxu0 %v329
    %375 = vmatpush.msra.mxu0 %v328
    %376 = vmatmul.f32.gmra.mxu0 %v312
    %v377 = vpop.f32.mrf.mxu0
    %v378 = vadd.f32 0.0, %v377
    %379 = vmatmul.f32.gmra.mxu0 %v313
    %v380 = vpop.f32.mrf.mxu0
    %v381 = vadd.f32 0.0, %v380
    %382 = vdwg.mxu0
    %383 = vmatpush.msra.mxu0 %v359
    %384 = vmatpush.msra.mxu0 %v358
    %385 = vmatpush.msra.mxu0 %v357
    %386 = vmatpush.msra.mxu0 %v356
    %387 = vmatpush.msra.mxu0 %v355
    %388 = vmatpush.msra.mxu0 %v354
    %389 = vmatpush.msra.mxu0 %v353
    %390 = vmatpush.msra.mxu0 %v352
    %391 = vmatpush.msra.mxu0 %v351
    %392 = vmatpush.msra.mxu0 %v350
    %393 = vmatpush.msra.mxu0 %v349
    %394 = vmatpush.msra.mxu0 %v348
    %395 = vmatpush.msra.mxu0 %v347
    %396 = vmatpush.msra.mxu0 %v346
    %397 = vmatpush.msra.mxu0 %v345
    %398 = vmatpush.msra.mxu0 %v344
    %399 = vmatmul.f32.gmra.mxu0 %v326
    %v400 = vpop.f32.mrf.mxu0
    %v401 = vadd.f32 %v378, %v400
    %402 = vmatmul.f32.gmra.mxu0 %v327
    %v403 = vpop.f32.mrf.mxu0
    %v404 = vadd.f32 %v381, %v403
    %405 = vdwg.mxu0
    %406 = vst.msk [vmem:[#allocation2] sm:$0xff] %vm296, %v401
    %407 = vst.msk [vmem:[#allocation2 + $0x8] sm:$0xff] %vm296, %v404
    // Predicated region
    $region14: #{tpu_custom_call.1} parent=1 // pred_check
      _
    $region15: #{tpu_custom_call.1} parent=1 // pred_check_branch
      %409 = sbr.rel (0) target = $region17
    $region16: #{tpu_custom_call.1} parent=1 // pred_region
      %411 = vsyncadd [#allocation3], 0
      %s412 = sshll.u32 [#allocation2], 4
      %s413 = int_to_ptr.vmem [resolvable:$true] %s412
      %s414 = sshll.u32 %s3, 4
      %s415 = int_to_ptr.hbm [resolvable:$true] %s414
      %420 = dma.vmem_to_hbm [thread:$0]  %s413, 256, %s415, [#allocation3], 128, 128, 8
    $region17: #{tpu_custom_call.1} parent=1 // pred_fallthru
      _
    // Predicated region
    $region18: #{tpu_custom_call.1} parent=1 // pred_check
      _
    $region19: #{tpu_custom_call.1} parent=1 // pred_check_branch
      %422 = sbr.rel (0) target = $region21
    $region20: #{tpu_custom_call.1} parent=1 // pred_region
      %424 = dma.done [#allocation3], 256
    $region21: #{tpu_custom_call.1} parent=1 // pred_fallthru
      _
    %425 = vsyncpa [#allocation3], 1

</llo_original>
